<compile_context>
chip_gen: v7x
topology: tpu7x:2x2x1
jax: 0.10.0
libtpu: 0.0.40
codegen_flags: <defaults>
</compile_context>

<pallas_src>
import functools
import math

import jax
import jax.numpy as jnp
from jax import lax
from jax.experimental import pallas as pl
from jax.experimental.pallas import tpu as pltpu

# Above the 16 MiB (v5e) / 32 MiB (v6e, v7x) default scoped limits, below v7x's
# 64 MiB physical VMEM.
_VMEM_LIMIT = 48 * 1024 * 1024


# ----------------------------------------------------------------------------
# Flat "shift-conv": KxK stride-1 'same' conv on a zero-padded flattened canvas.
#   canvas : (C, Lc), Lc = (H + 2p + 2) * Wc, Wc = W + 2p; the image sits at rows
#            [p+1, p+1+H), cols [p, p+W) of the (Hc, Wc) canvas; zeros elsewhere.
#   output : (Cout, Lout), Lout = H * Wc; cols [p, p+W) of each Wc-row are the
#            valid 'same'-conv result, the other 2p cols per row are discarded.
# Each tap (di, dj) is the contiguous lane slice starting at s = (1+di)*Wc + dj - p,
# so no per-tap masking / gather is needed.  Taps are staged into a (K*K*C, Lout)
# bf16 scratch (in-VMEM im2col) and contracted with ONE MXU GEMM.
# ----------------------------------------------------------------------------
def _stage_taps_and_gemm(src_ref, cols_ref, w_ref, b_ref, *, K, p, Wc, Lout, Cin, relu):
    for di in range(K):
        for dj in range(K):
            t = di * K + dj
            s = (1 + di) * Wc + dj - p
            cols_ref[t * Cin:(t + 1) * Cin, :] = src_ref[:, s:s + Lout]
    y = jnp.dot(w_ref[...], cols_ref[...], preferred_element_type=jnp.float32)
    y = y + b_ref[...]                       # (Cout, 1) broadcasts over lanes
    if relu:
        y = jnp.maximum(y, 0.0)
    return y                                 # (Cout, Lout) f32


def _conv_same_kernel(xc_ref, w_ref, b_ref, o_ref, cols_ref,
                      *, K, p, Wc, Lout, Cin, relu):
    y = _stage_taps_and_gemm(xc_ref, cols_ref, w_ref, b_ref,
                             K=K, p=p, Wc=Wc, Lout=Lout, Cin=Cin, relu=relu)
    o_ref[...] = y.astype(o_ref.dtype)


def _stack_conv_kernel(xc_ref, w1_ref, b1_ref, w2_ref, b2_ref, m_ref, o_ref,
                       cols1_ref, mid_ref, cols2_ref, *, K, p, Wc, Lout, Cin, Cmid):
    """Two fused KxK 'same' convs + ReLU; intermediate stays in a bf16 VMEM canvas."""
    pad = (p + 1) * Wc
    y1 = _stage_taps_and_gemm(xc_ref, cols1_ref, w1_ref, b1_ref,
                              K=K, p=p, Wc=Wc, Lout=Lout, Cin=Cin, relu=True)
    # Zero the horizontal-pad columns of conv1's output: they become conv2's padding.
    y1 = y1 * m_ref[...]
    # Re-zero top/bottom pad rows every step (tiny) because the batch grid axis is
    # megacore-"parallel" and scratch is per-core, so a program_id()==0 guard would
    # leave one core's pad rows uninitialised.
    mid_ref[:, 0:pad] = jnp.zeros((Cmid, pad), mid_ref.dtype)
    mid_ref[:, pad + Lout:] = jnp.zeros((Cmid, pad), mid_ref.dtype)
    mid_ref[:, pad:pad + Lout] = y1.astype(mid_ref.dtype)
    y2 = _stage_taps_and_gemm(mid_ref, cols2_ref, w2_ref, b2_ref,
                              K=K, p=p, Wc=Wc, Lout=Lout, Cin=Cmid, relu=True)
    o_ref[...] = y2.astype(o_ref.dtype)


def _canvas_pad(x, p):
    """(N, C, H, W) -> (N, C, (H+2p+2)*(W+2p)) bf16 zero-padded flat canvas."""
    N, C, H, W = x.shape
    xp = jnp.pad(x, ((0, 0), (0, 0), (p + 1, p + 1), (p, p)))
    return xp.reshape(N, C, (H + 2 * p + 2) * (W + 2 * p)).astype(jnp.bfloat16)


def _repack_conv_w(w):
    """HWIO (K, K, Cin, Cout) -> (Cout, K*K*Cin) bf16, columns ordered (di, dj, cin)."""
    K, _, Cin, Cout = w.shape
    return jnp.transpose(w, (3, 0, 1, 2)).reshape(Cout, K * K * Cin).astype(jnp.bfloat16)


def _valid_col_mask(H, W, p):
    """(1, H*Wc) f32: 1 where the canvas column is a real image column, else 0."""
    Wc = W + 2 * p
    col = jnp.arange(H * Wc, dtype=jnp.int32) % Wc
    return ((col >= p) & (col < p + W)).astype(jnp.float32).reshape(1, H * Wc)


def conv_same(x, w, b, act=None):
    """KxK (odd K) stride-1 'same' conv.  x: (N, Cin, H, W) -> (N, Cout, H, W) bf16."""
    N, Cin, H, W = x.shape
    K, _, _, Cout = w.shape
    p = K // 2
    Wc = W + 2 * p
    Lc = (H + 2 * p + 2) * Wc
    Lout = H * Wc
    out = pl.pallas_call(
        functools.partial(_conv_same_kernel, K=K, p=p, Wc=Wc, Lout=Lout, Cin=Cin,
                          relu=(act == "relu")),
        grid=(N,),
        in_specs=[
            pl.BlockSpec((None, Cin, Lc), lambda n: (n, 0, 0)),
            pl.BlockSpec((Cout, K * K * Cin), lambda n: (0, 0)),
            pl.BlockSpec((Cout, 1), lambda n: (0, 0)),
        ],
        out_specs=pl.BlockSpec((None, Cout, Lout), lambda n: (n, 0, 0)),
        out_shape=jax.ShapeDtypeStruct((N, Cout, Lout), jnp.bfloat16),
        scratch_shapes=[pltpu.VMEM((K * K * Cin, Lout), jnp.bfloat16)],
        compiler_params=pltpu.CompilerParams(
            dimension_semantics=("parallel",), vmem_limit_bytes=_VMEM_LIMIT),
    )(_canvas_pad(x, p), _repack_conv_w(w), b.reshape(Cout, 1).astype(jnp.float32))
    # Drop the horizontal canvas columns (garbage) to recover the 'same' output.
    return out.reshape(N, Cout, H, Wc)[:, :, :, p:p + W]


def stack_conv(x, plist):
    """StackConv: two KxK stride-1 'same' convs + ReLU fused into ONE pallas_call."""
    (w1, b1), (w2, b2) = plist
    N, Cin, H, W = x.shape
    K, _, _, Cmid = w1.shape
    Cout = w2.shape[-1]
    p = K // 2
    Wc = W + 2 * p
    Lc = (H + 2 * p + 2) * Wc
    Lout = H * Wc
    # TODO(synk): for very large H*W the whole-image block could be split into haloed
    #             row tiles (grid=(N, H/tile_h)); per-image blocks fit comfortably at
    #             this model's channel widths up to ~200x200.
    out = pl.pallas_call(
        functools.partial(_stack_conv_kernel, K=K, p=p, Wc=Wc, Lout=Lout,
                          Cin=Cin, Cmid=Cmid),
        grid=(N,),
        in_specs=[
            pl.BlockSpec((None, Cin, Lc), lambda n: (n, 0, 0)),
            pl.BlockSpec((Cmid, K * K * Cin), lambda n: (0, 0)),
            pl.BlockSpec((Cmid, 1), lambda n: (0, 0)),
            pl.BlockSpec((Cout, K * K * Cmid), lambda n: (0, 0)),
            pl.BlockSpec((Cout, 1), lambda n: (0, 0)),
            pl.BlockSpec((1, Lout), lambda n: (0, 0)),
        ],
        out_specs=pl.BlockSpec((None, Cout, Lout), lambda n: (n, 0, 0)),
        out_shape=jax.ShapeDtypeStruct((N, Cout, Lout), jnp.bfloat16),
        scratch_shapes=[
            pltpu.VMEM((K * K * Cin, Lout), jnp.bfloat16),   # im2col stage, conv1
            pltpu.VMEM((Cmid, Lc), jnp.bfloat16),            # conv1 -> conv2 canvas
            pltpu.VMEM((K * K * Cmid, Lout), jnp.bfloat16),  # im2col stage, conv2
        ],
        compiler_params=pltpu.CompilerParams(
            dimension_semantics=("parallel",), vmem_limit_bytes=_VMEM_LIMIT),
    )(_canvas_pad(x, p),
      _repack_conv_w(w1), b1.reshape(Cmid, 1).astype(jnp.float32),
      _repack_conv_w(w2), b2.reshape(Cout, 1).astype(jnp.float32),
      _valid_col_mask(H, W, p))
    return out.reshape(N, Cout, H, Wc)[:, :, :, p:p + W]


# ----------------------------------------------------------------------------
# Pointwise GEMM kernel: Y[n] = act(W @ X[n] + b), channels-first, lane-dense output.
# Used for 1x1 OutConv, ConvTranspose2x2 (as 4*Cout outputs) and the CESP conv pool.
# ----------------------------------------------------------------------------
def _pointwise_gemm_kernel(x_ref, w_ref, b_ref, o_ref, *, relu):
    y = jnp.dot(w_ref[...], x_ref[...], preferred_element_type=jnp.float32)
    y = y + b_ref[...]
    if relu:
        y = jnp.maximum(y, 0.0)
    o_ref[...] = y.astype(o_ref.dtype)


def pointwise_gemm(x, w2, b, act=None, tile_l=2048, out_dtype=jnp.bfloat16):
    """x: (N, Cin, L), w2: (Cout, Cin), b: (Cout,) -> (N, Cout, L)."""
    N, Cin, L = x.shape
    Cout = w2.shape[0]
    tl = L if (L <= tile_l or L % 128 != 0) else tile_l
    return pl.pallas_call(
        functools.partial(_pointwise_gemm_kernel, relu=(act == "relu")),
        grid=(N, pl.cdiv(L, tl)),
        in_specs=[
            pl.BlockSpec((None, Cin, tl), lambda n, l: (n, 0, l)),
            pl.BlockSpec((Cout, Cin), lambda n, l: (0, 0)),
            pl.BlockSpec((Cout, 1), lambda n, l: (0, 0)),
        ],
        out_specs=pl.BlockSpec((None, Cout, tl), lambda n, l: (n, 0, l)),
        out_shape=jax.ShapeDtypeStruct((N, Cout, L), out_dtype),
        compiler_params=pltpu.CompilerParams(
            dimension_semantics=("parallel", "parallel"), vmem_limit_bytes=_VMEM_LIMIT),
    )(x.astype(jnp.bfloat16), w2.astype(jnp.bfloat16),
      b.reshape(Cout, 1).astype(jnp.float32))


# ----------------------------------------------------------------------------
# MaxPool 2x2 / stride 2 (elementwise 4-way max kernel, lane-dense blocks).
# ----------------------------------------------------------------------------
def _max4_kernel(a_ref, b_ref, c_ref, d_ref, o_ref):
    o_ref[...] = jnp.maximum(jnp.maximum(a_ref[...], b_ref[...]),
                             jnp.maximum(c_ref[...], d_ref[...]))


def maxpool2x2(x):
    """x: (N, C, H, W) -> (N, C, H//2, W//2)."""
    N, C, H, W = x.shape
    assert H % 2 == 0 and W % 2 == 0, "maxpool2x2 expects even H, W"
    Ho, Wo = H // 2, W // 2
    L = Ho * Wo
    # TODO(synk): the four strided-slice gathers cost one extra HBM pass of the input
    #             in XLA; an in-kernel strided load (or fusing the pool into the next
    #             StackConv's canvas build) would remove it.
    parts = [x[:, :, dh::2, dw::2].reshape(N, C, L) for dh in (0, 1) for dw in (0, 1)]
    out = pl.pallas_call(
        _max4_kernel,
        grid=(N,),
        in_specs=[pl.BlockSpec((None, C, L), lambda n: (n, 0, 0))] * 4,
        out_specs=pl.BlockSpec((None, C, L), lambda n: (n, 0, 0)),
        out_shape=jax.ShapeDtypeStruct((N, C, L), x.dtype),
        compiler_params=pltpu.CompilerParams(
            dimension_semantics=("parallel",), vmem_limit_bytes=_VMEM_LIMIT),
    )(*parts)
    return out.reshape(N, C, Ho, Wo)


# ----------------------------------------------------------------------------
# ConvTranspose 2x2 / stride 2 and CESP (conv subaperture pooling + nearest un-pool).
# ----------------------------------------------------------------------------
def conv_transpose2x2(x, wT, b):
    """x: (N, Cin, H, W), wT: (Cin, 2, 2, Cout), b: (Cout,) -> (N, Cout, 2H, 2W)."""
    N, Cin, H, W = x.shape
    Cout = wT.shape[-1]
    w4 = jnp.transpose(wT, (1, 2, 3, 0)).reshape(4 * Cout, Cin)   # rows (a, b, cout)
    b4 = jnp.tile(b, 4)
    y = pointwise_gemm(x.reshape(N, Cin, H * W), w4, b4, act=None)
    y = y.reshape(N, 2, 2, Cout, H, W)
    # TODO(synk): the 2x2 pixel shuffle is an XLA transpose; fusing it into the next
    #             StackConv's canvas construction would save one HBM round trip.
    return jnp.transpose(y, (0, 3, 4, 1, 5, 2)).reshape(N, Cout, 2 * H, 2 * W)


def cesp_block(x, p_cesp, k=2):
    # TODO(synk): exact CESP body not provided; assumed conv "subaperture pooling"
    #             (kernel=stride=k, pool_type='conv') followed by nearest un-pool.
    w, b = p_cesp                                   # HWIO (k, k, Cin, Cout)
    N, Cin, H, W = x.shape
    Cout = w.shape[-1]
    Ho, Wo = H // k, W // k
    parts = [x[:, :, a::k, b_::k] for a in range(k) for b_ in range(k)]
    xs = jnp.concatenate(parts, axis=1).reshape(N, k * k * Cin, Ho * Wo)
    w2 = jnp.transpose(w, (3, 0, 1, 2)).reshape(Cout, k * k * Cin)
    y = pointwise_gemm(xs, w2, b, act=None).reshape(N, Cout, Ho, Wo)
    # TODO(synk): the nearest un-pool could be fused into the consumer's canvas build.
    return jnp.repeat(jnp.repeat(y, k, axis=2), k, axis=3)


# ----------------------------------------------------------------------------
# CEyeNet blocks & forward
# ----------------------------------------------------------------------------
def down_block(x, plist):
    return stack_conv(maxpool2x2(x), plist)


def up_block(x, skip, p):
    wT, bT = p["convT"]
    xu = conv_transpose2x2(x, wT, bT)
    # TODO(synk): skip/xu could be fed to stack_conv as two inputs (split weight rows)
    #             to avoid materialising the concatenated tensor in HBM.
    xc = jnp.concatenate([skip, xu], axis=1)        # skip-first (UNet convention)
    return stack_conv(xc, p["stack"])


def ceyenet_forward(params, x_nchw):
    x = x_nchw.astype(jnp.bfloat16)

    x_down = [stack_conv(x, params["inc"])]
    for d in params["down"]:
        x_down.append(down_block(x_down[-1], d))

    # CESP applied to every encoder level except the deepest (pool_type == 'conv').
    x_tp = [cesp_block(xd, c) for xd, c in zip(x_down[:-1], params["cesp"])]

    xc = x_down[-1]
    for i, u in enumerate(params["up"]):
        xc = up_block(xc, x_tp[-1 - i], u)

    w_o, b_o = params["outc"]                                   # 1x1 OutConv -> 2ch
    N, C, H, W = xc.shape
    w2 = jnp.transpose(w_o, (3, 0, 1, 2)).reshape(w_o.shape[-1], C)
    y = pointwise_gemm(xc.reshape(N, C, H * W), w2, b_o, act=None)
    y = y.reshape(N, w_o.shape[-1], H, W)

    w_a, b_a = params["align"]
    y = conv_same(y, w_a, b_a, act=None)            # 7x7 pad3 (output_size [200,200])
    return y.astype(jnp.float32)


# ----------------------------------------------------------------------------
# Deterministic parameter construction (synthetic, no checkpoint)
# ----------------------------------------------------------------------------
def init_params(key, base=4, num_pool=2, in_ch=1, out_ch=2, cesp_k=2):
    cnt = [0]

    def nxt():
        cnt[0] += 1
        return jax.random.fold_in(key, cnt[0])

    def conv_p(kh, kw, cin, cout):
        kk = nxt()
        w = jax.random.normal(kk, (kh, kw, cin, cout), jnp.float32) / math.sqrt(kh * kw * cin)
        b = jax.random.normal(jax.random.fold_in(kk, 7), (cout,), jnp.float32) * 0.01
        return (w, b)

    def stack_p(cin, cout):
        return [conv_p(3, 3, cin, cout), conv_p(3, 3, cout, cout)]

    params = {}
    params["inc"] = stack_p(in_ch, base)
    params["down"] = [stack_p(base * 2 ** i, base * 2 ** (i + 1)) for i in range(num_pool)]
    params["cesp"] = [conv_p(cesp_k, cesp_k, base * 2 ** i, base * 2 ** i) for i in range(num_pool)]

    ups = []
    for i in range(num_pool, 0, -1):
        cin, cout = base * 2 ** i, base * 2 ** (i - 1)
        kk = nxt()
        wT = jax.random.normal(kk, (cin, 2, 2, cout), jnp.float32) / math.sqrt(cin)
        bT = jax.random.normal(jax.random.fold_in(kk, 7), (cout,), jnp.float32) * 0.01
        ups.append({"convT": (wT, bT), "stack": stack_p(2 * cout, cout)})
    params["up"] = ups

    params["outc"] = conv_p(1, 1, base, out_ch)
    params["align"] = conv_p(7, 7, out_ch, out_ch)   # output_size == [200, 200]
    return params


# ----------------------------------------------------------------------------
if __name__ == "__main__":
    key = jax.random.PRNGKey(0)
    x = jax.random.normal(key, (2, 1, 16, 16), jnp.float32)   # small NCHW input
    params = init_params(jax.random.PRNGKey(1), base=4, num_pool=2)

    # spot-check 1: flat shift-conv kernel vs lax.conv (f32 ref, bf16 kernel operands)
    w0, b0 = params["inc"][0]
    ref = lax.conv_general_dilated(
        x, w0, (1, 1), [(1, 1), (1, 1)],
        dimension_numbers=("NCHW", "HWIO", "NCHW")) + b0.reshape(1, -1, 1, 1)
    got = conv_same(x, w0, b0, act=None).astype(jnp.float32)
    assert bool(jnp.allclose(ref, got, atol=5e-2, rtol=5e-2)), "Pallas conv mismatch"

    # spot-check 2: fused StackConv kernel vs two lax convs + ReLU
    (w1, b1), (w2, b2) = params["inc"]
    r1 = jax.nn.relu(lax.conv_general_dilated(
        x, w1, (1, 1), [(1, 1), (1, 1)],
        dimension_numbers=("NCHW", "HWIO", "NCHW")) + b1.reshape(1, -1, 1, 1))
    r2 = jax.nn.relu(lax.conv_general_dilated(
        r1, w2, (1, 1), [(1, 1), (1, 1)],
        dimension_numbers=("NCHW", "HWIO", "NCHW")) + b2.reshape(1, -1, 1, 1))
    got2 = stack_conv(x, params["inc"]).astype(jnp.float32)
    assert bool(jnp.allclose(r2, got2, atol=1e-1, rtol=1e-1)), "Pallas StackConv mismatch"

    fwd = jax.jit(ceyenet_forward)
    y = fwd(params, x)
    jax.block_until_ready(y)

    assert y.shape == (2, 2, 16, 16), y.shape
    assert bool(jnp.all(jnp.isfinite(y)))
    print("KERNEL_OK")
</pallas_src>

<mosaic_0001>
module attributes {stable_mosaic.version = 11 : i64} {
  func.func @_conv_same_kernel(%arg0: i32, %arg1: memref<1x1x360xbf16, #tpu.memory_space<vmem>>, %arg2: memref<4x9xbf16, #tpu.memory_space<vmem>>, %arg3: memref<4x1xf32, #tpu.memory_space<vmem>>, %arg4: memref<1x4x288xbf16, #tpu.memory_space<vmem>>, %arg5: memref<9x288xbf16, #tpu.memory_space<vmem>>) attributes {dimension_semantics = [#tpu.dimension_semantics<parallel>], iteration_bounds = array<i64: 2>, scalar_prefetch = 0 : i64, scratch_operands = 1 : i64, tpu.core_type = #tpu.core_type<tc>, window_params = [{transform_indices = @transform_0, window_bounds = array<i64: 1, 1, 360>}, {pipeline_mode = #tpu.pipeline_mode<synchronous>, transform_indices = @transform_1, window_bounds = array<i64: 4, 9>}, {pipeline_mode = #tpu.pipeline_mode<synchronous>, transform_indices = @transform_2, window_bounds = array<i64: 4, 1>}, {transform_indices = @transform_3, window_bounds = array<i64: 1, 4, 288>}]} {
    %c0 = arith.constant 0 : index
    %c0_0 = arith.constant 0 : index
    %c17 = arith.constant 17 : index
    %0 = vector.load %arg1[%c0, %c0_0, %c17] : memref<1x1x360xbf16, #tpu.memory_space<vmem>>, vector<1x1x288xbf16>
    %1 = vector.shape_cast %0 : vector<1x1x288xbf16> to vector<1x288xbf16>
    %c0_1 = arith.constant 0 : index
    %c0_2 = arith.constant 0 : index
    %2 = vector.load %arg5[%c0_1, %c0_2] : memref<9x288xbf16, #tpu.memory_space<vmem>>, vector<1x288xbf16>
    tpu.vector_store %arg5[%c0_1, %c0_2], %1 {strides = array<i32>} : memref<9x288xbf16, #tpu.memory_space<vmem>>, vector<1x288xbf16>,
    %c0_3 = arith.constant 0 : index
    %c0_4 = arith.constant 0 : index
    %c18 = arith.constant 18 : index
    %3 = vector.load %arg1[%c0_3, %c0_4, %c18] : memref<1x1x360xbf16, #tpu.memory_space<vmem>>, vector<1x1x288xbf16>
    %4 = vector.shape_cast %3 : vector<1x1x288xbf16> to vector<1x288xbf16>
    %c1 = arith.constant 1 : index
    %c0_5 = arith.constant 0 : index
    %5 = vector.load %arg5[%c1, %c0_5] : memref<9x288xbf16, #tpu.memory_space<vmem>>, vector<1x288xbf16>
    tpu.vector_store %arg5[%c1, %c0_5], %4 {strides = array<i32>} : memref<9x288xbf16, #tpu.memory_space<vmem>>, vector<1x288xbf16>,
    %c0_6 = arith.constant 0 : index
    %c0_7 = arith.constant 0 : index
    %c19 = arith.constant 19 : index
    %6 = vector.load %arg1[%c0_6, %c0_7, %c19] : memref<1x1x360xbf16, #tpu.memory_space<vmem>>, vector<1x1x288xbf16>
    %7 = vector.shape_cast %6 : vector<1x1x288xbf16> to vector<1x288xbf16>
    %c2 = arith.constant 2 : index
    %c0_8 = arith.constant 0 : index
    %8 = vector.load %arg5[%c2, %c0_8] : memref<9x288xbf16, #tpu.memory_space<vmem>>, vector<1x288xbf16>
    tpu.vector_store %arg5[%c2, %c0_8], %7 {strides = array<i32>} : memref<9x288xbf16, #tpu.memory_space<vmem>>, vector<1x288xbf16>,
    %c0_9 = arith.constant 0 : index
    %c0_10 = arith.constant 0 : index
    %c35 = arith.constant 35 : index
    %9 = vector.load %arg1[%c0_9, %c0_10, %c35] : memref<1x1x360xbf16, #tpu.memory_space<vmem>>, vector<1x1x288xbf16>
    %10 = vector.shape_cast %9 : vector<1x1x288xbf16> to vector<1x288xbf16>
    %c3 = arith.constant 3 : index
    %c0_11 = arith.constant 0 : index
    %11 = vector.load %arg5[%c3, %c0_11] : memref<9x288xbf16, #tpu.memory_space<vmem>>, vector<1x288xbf16>
    tpu.vector_store %arg5[%c3, %c0_11], %10 {strides = array<i32>} : memref<9x288xbf16, #tpu.memory_space<vmem>>, vector<1x288xbf16>,
    %c0_12 = arith.constant 0 : index
    %c0_13 = arith.constant 0 : index
    %c36 = arith.constant 36 : index
    %12 = vector.load %arg1[%c0_12, %c0_13, %c36] : memref<1x1x360xbf16, #tpu.memory_space<vmem>>, vector<1x1x288xbf16>
    %13 = vector.shape_cast %12 : vector<1x1x288xbf16> to vector<1x288xbf16>
    %c4 = arith.constant 4 : index
    %c0_14 = arith.constant 0 : index
    %14 = vector.load %arg5[%c4, %c0_14] : memref<9x288xbf16, #tpu.memory_space<vmem>>, vector<1x288xbf16>
    tpu.vector_store %arg5[%c4, %c0_14], %13 {strides = array<i32>} : memref<9x288xbf16, #tpu.memory_space<vmem>>, vector<1x288xbf16>,
    %c0_15 = arith.constant 0 : index
    %c0_16 = arith.constant 0 : index
    %c37 = arith.constant 37 : index
    %15 = vector.load %arg1[%c0_15, %c0_16, %c37] : memref<1x1x360xbf16, #tpu.memory_space<vmem>>, vector<1x1x288xbf16>
    %16 = vector.shape_cast %15 : vector<1x1x288xbf16> to vector<1x288xbf16>
    %c5 = arith.constant 5 : index
    %c0_17 = arith.constant 0 : index
    %17 = vector.load %arg5[%c5, %c0_17] : memref<9x288xbf16, #tpu.memory_space<vmem>>, vector<1x288xbf16>
    tpu.vector_store %arg5[%c5, %c0_17], %16 {strides = array<i32>} : memref<9x288xbf16, #tpu.memory_space<vmem>>, vector<1x288xbf16>,
    %c0_18 = arith.constant 0 : index
    %c0_19 = arith.constant 0 : index
    %c53 = arith.constant 53 : index
    %18 = vector.load %arg1[%c0_18, %c0_19, %c53] : memref<1x1x360xbf16, #tpu.memory_space<vmem>>, vector<1x1x288xbf16>
    %19 = vector.shape_cast %18 : vector<1x1x288xbf16> to vector<1x288xbf16>
    %c6 = arith.constant 6 : index
    %c0_20 = arith.constant 0 : index
    %20 = vector.load %arg5[%c6, %c0_20] : memref<9x288xbf16, #tpu.memory_space<vmem>>, vector<1x288xbf16>
    tpu.vector_store %arg5[%c6, %c0_20], %19 {strides = array<i32>} : memref<9x288xbf16, #tpu.memory_space<vmem>>, vector<1x288xbf16>,
    %c0_21 = arith.constant 0 : index
    %c0_22 = arith.constant 0 : index
    %c54 = arith.constant 54 : index
    %21 = vector.load %arg1[%c0_21, %c0_22, %c54] : memref<1x1x360xbf16, #tpu.memory_space<vmem>>, vector<1x1x288xbf16>
    %22 = vector.shape_cast %21 : vector<1x1x288xbf16> to vector<1x288xbf16>
    %c7 = arith.constant 7 : index
    %c0_23 = arith.constant 0 : index
    %23 = vector.load %arg5[%c7, %c0_23] : memref<9x288xbf16, #tpu.memory_space<vmem>>, vector<1x288xbf16>
    tpu.vector_store %arg5[%c7, %c0_23], %22 {strides = array<i32>} : memref<9x288xbf16, #tpu.memory_space<vmem>>, vector<1x288xbf16>,
    %c0_24 = arith.constant 0 : index
    %c0_25 = arith.constant 0 : index
    %c55 = arith.constant 55 : index
    %24 = vector.load %arg1[%c0_24, %c0_25, %c55] : memref<1x1x360xbf16, #tpu.memory_space<vmem>>, vector<1x1x288xbf16>
    %25 = vector.shape_cast %24 : vector<1x1x288xbf16> to vector<1x288xbf16>
    %c8 = arith.constant 8 : index
    %c0_26 = arith.constant 0 : index
    %26 = vector.load %arg5[%c8, %c0_26] : memref<9x288xbf16, #tpu.memory_space<vmem>>, vector<1x288xbf16>
    tpu.vector_store %arg5[%c8, %c0_26], %25 {strides = array<i32>} : memref<9x288xbf16, #tpu.memory_space<vmem>>, vector<1x288xbf16>,
    %c0_27 = arith.constant 0 : index
    %c0_28 = arith.constant 0 : index
    %27 = vector.load %arg2[%c0_27, %c0_28] : memref<4x9xbf16, #tpu.memory_space<vmem>>, vector<4x9xbf16>
    %c0_29 = arith.constant 0 : index
    %c0_30 = arith.constant 0 : index
    %28 = vector.load %arg5[%c0_29, %c0_30] : memref<9x288xbf16, #tpu.memory_space<vmem>>, vector<9x288xbf16>
    %cst = arith.constant dense<0.000000e+00> : vector<4x288xf32>
    %29 = tpu.matmul %27, %28, %cst {dimension_numbers = #tpu.dot_dimension_numbers<[1], [0], [0], [1], [0, 0, 1, 1], [], []>} : vector<4x9xbf16>, vector<9x288xbf16>, vector<4x288xf32> -> vector<4x288xf32>
    %c0_31 = arith.constant 0 : index
    %c0_32 = arith.constant 0 : index
    %30 = vector.load %arg3[%c0_31, %c0_32] : memref<4x1xf32, #tpu.memory_space<vmem>>, vector<4x1xf32>
    %31 = vector.broadcast %30 : vector<4x1xf32> to vector<4x288xf32>
    %32 = arith.addf %29, %31 : vector<4x288xf32>
    %33 = arith.truncf %32 : vector<4x288xf32> to vector<4x288xbf16>
    %c0_33 = arith.constant 0 : index
    %c0_34 = arith.constant 0 : index
    %c0_35 = arith.constant 0 : index
    %34 = vector.load %arg4[%c0_33, %c0_34, %c0_35] : memref<1x4x288xbf16, #tpu.memory_space<vmem>>, vector<1x4x288xbf16>
    %35 = vector.shape_cast %34 : vector<1x4x288xbf16> to vector<4x288xbf16>
    %36 = vector.shape_cast %33 : vector<4x288xbf16> to vector<1x4x288xbf16>
    tpu.vector_store %arg4[%c0_33, %c0_34, %c0_35], %36 {strides = array<i32>} : memref<1x4x288xbf16, #tpu.memory_space<vmem>>, vector<1x4x288xbf16>,
    return
  }
  func.func @transform_0(%arg0: i32) -> (i32, i32, i32) {
    %c0_i32 = arith.constant 0 : i32
    %c0_i32_0 = arith.constant 0 : i32
    %c0_i32_1 = arith.constant 0 : i32
    return %arg0, %c0_i32, %c0_i32_0 : i32, i32, i32
  }
  func.func @transform_1(%arg0: i32) -> (i32, i32) {
    %c0_i32 = arith.constant 0 : i32
    %c0_i32_0 = arith.constant 0 : i32
    %c0_i32_1 = arith.constant 0 : i32
    return %c0_i32, %c0_i32_0 : i32, i32
  }
  func.func @transform_2(%arg0: i32) -> (i32, i32) {
    %c0_i32 = arith.constant 0 : i32
    %c0_i32_0 = arith.constant 0 : i32
    %c0_i32_1 = arith.constant 0 : i32
    return %c0_i32, %c0_i32_0 : i32, i32
  }
  func.func @transform_3(%arg0: i32) -> (i32, i32, i32) {
    %c0_i32 = arith.constant 0 : i32
    %c0_i32_0 = arith.constant 0 : i32
    %c0_i32_1 = arith.constant 0 : i32
    return %arg0, %c0_i32, %c0_i32_0 : i32, i32, i32
  }
}

</mosaic_0001>

<llo_original>
// kernel: tpu_custom_call.1
$region0: #{tpu_custom_call.1}
  #allocation0 [shape = 'u32[]', space=smem, size = 0x4, offset = 0x4, fixed_abs, tag = 'smem constant byte address 0x4 - core index']
  #allocation1 [shape = 'u32[144,128]{1,0:T(1,128)}', space=vmem, size = 0x12000, scoped, tag = 'internal scratch']
  #allocation2 [shape = 'bf16[9,288]{1,0:T(8,128)(2,1)}', space=vmem, size = 0x3000, scoped, tag = 'scratch operand']
  %s0 = inlined_call_operand.vmem [shape: bf16[2,1,360], index: 0, kind: input, shape index: {}]
  %s1 = inlined_call_operand.vmem [shape: bf16[4,9], index: 1, kind: input, shape index: {}]
  %s2 = inlined_call_operand.vmem [shape: f32[4,1], index: 2, kind: input, shape index: {}]
  %s3 = inlined_call_operand.hbm [shape: bf16[2,4,288], index: 3, kind: output, shape index: {}]
  %s4 = sld [smem:[#allocation0]]
  $region45: #{tpu_custom_call.1} parent=0
    _
  %s6 = ssub.s32 1, %s4
  %s7 = scalar_select 0, %s6, %s4
  $region1: #{tpu_custom_call.1} parent=0
    #allocation3 [shape = 'u8[6144]{0}', space=vmem, size = 0x1800, scoped, tag = 'output window, operand 0']
    #allocation4 [shape = 's32[2]{0}', space=sflag, size = 0x8, scoped, tag = 'scoped memory for tpu_custom_call.1']
    %8 = vsyncpa [#allocation4], 0
    %s9 = scalar_lea.sflag [#allocation4], 1
    %10 = vsyncpa %s9, 0
    loop: start=0, step=1, limit=4
    $region2: #{tpu_custom_call.1} parent=1 // loop_pre_header
      _
    $region3: #{tpu_custom_call.1} parent=1 // loop_header
      %s12 = sphi 0, %s16
      %p13 = scmp.ge.s32.totalorder %s12, 4
      %s22 = sphi 0, %s24
      %s25 = sphi 0, %s22
      %s26 = sphi 0, %s25
      %s42 = sphi 0, %s26
      %s46 = sphi 0, %s46
      %s48 = sphi 0, %s46
      %s49 = sphi 0, %s48
      %s63 = sphi 0, %s49
      %s67 = sphi 0, %s67
      %s69 = sphi 0, %s67
      %s70 = sphi 0, %s69
      %s84 = sphi 0, %s70
      %s90 = sphi 0, %s92
      %s93 = sphi 0, %s90
      %s94 = sphi 0, %s93
      %s110 = sphi 0, %s94
    $region4: #{tpu_custom_call.1} parent=1 // loop_header_branch
      %15 = sbr.rel (%p13) target = $region8
    $region5: #{tpu_custom_call.1} parent=1 // loop_body
      %s17 = ssub.s32 %s12, 1
      %s18 = ssub.s32 %s12, 2
      %s19 = sadd.s32 %s12, 1
      %s20 = ssub.s32 %s12, %s19
      %p21 = scmp.eq.s32.totalorder %s20, 0
      %s23 = sadd.s32 %s22, 1
      %s24 = scalar_select %p21, %s22, %s23
      %p27 = pneg %p21
      %p28 = scmp.eq.s32.totalorder %s12, 1
      %p29 = por %p27, %p28
      %p30 = scmp.ne.s32.totalorder %s22, %s25
      %p31 = scmp.eq.s32.totalorder %s12, 0
      %p32 = por %p30, %p31
      %p33 = scmp.ne.s32.totalorder %s22, %s25
      %p34 = scmp.eq.s32.totalorder %s17, 1
      %p35 = por %p33, %p34
      %p36 = scmp.ne.s32.totalorder %s25, %s26
      %p37 = scmp.eq.s32.totalorder %s17, 0
      %p38 = por %p36, %p37
      %p39 = scmp.ne.s32.totalorder %s25, %s26
      %p40 = scmp.eq.s32.totalorder %s18, 1
      %p41 = por %p39, %p40
      %p43 = scmp.ne.s32.totalorder %s26, %s42
      %p44 = scmp.eq.s32.totalorder %s18, 0
      %p45 = por %p43, %p44
      %s47 = sadd.s32 %s46, 1
      %p50 = scmp.eq.s32.totalorder %s12, 1
      %p51 = scmp.ne.s32.totalorder %s46, %s48
      %p52 = scmp.eq.s32.totalorder %s12, 0
      %p53 = por %p51, %p52
      %p54 = scmp.ne.s32.totalorder %s46, %s48
      %p55 = scmp.eq.s32.totalorder %s17, 1
      %p56 = por %p54, %p55
      %p57 = scmp.ne.s32.totalorder %s48, %s49
      %p58 = scmp.eq.s32.totalorder %s17, 0
      %p59 = por %p57, %p58
      %p60 = scmp.ne.s32.totalorder %s48, %s49
      %p61 = scmp.eq.s32.totalorder %s18, 1
      %p62 = por %p60, %p61
      %p64 = scmp.ne.s32.totalorder %s49, %s63
      %p65 = scmp.eq.s32.totalorder %s18, 0
      %p66 = por %p64, %p65
      %s68 = sadd.s32 %s67, 1
      %p71 = scmp.eq.s32.totalorder %s12, 1
      %p72 = scmp.ne.s32.totalorder %s67, %s69
      %p73 = scmp.eq.s32.totalorder %s12, 0
      %p74 = por %p72, %p73
      %p75 = scmp.ne.s32.totalorder %s67, %s69
      %p76 = scmp.eq.s32.totalorder %s17, 1
      %p77 = por %p75, %p76
      %p78 = scmp.ne.s32.totalorder %s69, %s70
      %p79 = scmp.eq.s32.totalorder %s17, 0
      %p80 = por %p78, %p79
      %p81 = scmp.ne.s32.totalorder %s69, %s70
      %p82 = scmp.eq.s32.totalorder %s18, 1
      %p83 = por %p81, %p82
      %p85 = scmp.ne.s32.totalorder %s70, %s84
      %p86 = scmp.eq.s32.totalorder %s18, 0
      %p87 = por %p85, %p86
      %s88 = ssub.s32 %s12, %s19
      %p89 = scmp.eq.s32.totalorder %s88, 0
      %s91 = sadd.s32 %s90, 1
      %s92 = scalar_select %p89, %s90, %s91
      %p95 = pneg %p89
      %p96 = scmp.eq.s32.totalorder %s12, 1
      %p97 = por %p95, %p96
      %p98 = scmp.ne.s32.totalorder %s90, %s93
      %p99 = scmp.eq.s32.totalorder %s12, 0
      %p100 = por %p98, %p99
      %p101 = scmp.ne.s32.totalorder %s90, %s93
      %p102 = scmp.eq.s32.totalorder %s17, 1
      %p103 = por %p101, %p102
      %p104 = scmp.ne.s32.totalorder %s93, %s94
      %p105 = scmp.eq.s32.totalorder %s17, 0
      %p106 = por %p104, %p105
      %p107 = scmp.ne.s32.totalorder %s93, %s94
      %p108 = scmp.eq.s32.totalorder %s18, 1
      %p109 = por %p107, %p108
      %p111 = scmp.ne.s32.totalorder %s94, %s110
      %p112 = scmp.eq.s32.totalorder %s18, 0
      %p113 = por %p111, %p112
      %p114 = scmp.le.s32.totalorder 1, %s12
      %p115 = scmp.lt.s32.totalorder %s12, 3
      %p116 = pnand %p114, %p115
      %p117 = pneg %p116
      // Predicated region
      $region9: #{tpu_custom_call.1} parent=5 // pred_check
        _
      $region10: #{tpu_custom_call.1} parent=5 // pred_check_branch
        %119 = sbr.rel (%p116) target = $region12
      $region11: #{tpu_custom_call.1} parent=5 // pred_region
        %s120 = ssub.s32 %s12, 1
        // Predicated region
        $region13: #{tpu_custom_call.1} parent=11 // pred_check
          %p121 = pneg %p59
        $region14: #{tpu_custom_call.1} parent=11 // pred_check_branch
          %123 = sbr.rel (%p121) target = $region16
        $region15: #{tpu_custom_call.1} parent=11 // pred_region
          _
        $region16: #{tpu_custom_call.1} parent=11 // pred_fallthru
          _
        // Predicated region
        $region17: #{tpu_custom_call.1} parent=11 // pred_check
          %p124 = pneg %p80
        $region18: #{tpu_custom_call.1} parent=11 // pred_check_branch
          %126 = sbr.rel (%p124) target = $region20
        $region19: #{tpu_custom_call.1} parent=11 // pred_region
          _
        $region20: #{tpu_custom_call.1} parent=11 // pred_fallthru
          _
      $region12: #{tpu_custom_call.1} parent=5 // pred_fallthru
        _
      %p127 = scmp.lt.s32.totalorder %s12, 2
      // Predicated region
      $region21: #{tpu_custom_call.1} parent=5 // pred_check
        %p128 = pneg %p127
      $region22: #{tpu_custom_call.1} parent=5 // pred_check_branch
        %130 = sbr.rel (%p128) target = $region24
      $region23: #{tpu_custom_call.1} parent=5 // pred_region
        // Predicated region
        $region25: #{tpu_custom_call.1} parent=23 // pred_check
          %p131 = pneg %p32
        $region26: #{tpu_custom_call.1} parent=23 // pred_check_branch
          %133 = sbr.rel (%p131) target = $region28
        $region27: #{tpu_custom_call.1} parent=23 // pred_region
          %p134 = scmp.lt.s32.totalorder %s12, 1
          %s135 = scalar_select %p134, %s12, 1
          %s136 = smul.addr %s135, 3
          %s137 = scalar_lea.vmem %s0, %s136
        $region28: #{tpu_custom_call.1} parent=23 // pred_fallthru
          _
      $region24: #{tpu_custom_call.1} parent=5 // pred_fallthru
        _
      %p138 = scmp.le.s32.totalorder 1, %s12
      %p139 = scmp.lt.s32.totalorder %s12, 3
      %p140 = pnand %p138, %p139
      %p141 = pneg %p140
      // Predicated region
      $region29: #{tpu_custom_call.1} parent=5 // pred_check
        _
      $region30: #{tpu_custom_call.1} parent=5 // pred_check_branch
        %143 = sbr.rel (%p140) target = $region32
      $region31: #{tpu_custom_call.1} parent=5 // pred_region
        %s144 = ssub.s32 %s12, 1
        %p145 = scmp.lt.s32.totalorder %s17, 1
        %s146 = scalar_select %p145, %s17, 1
        %s147 = smul.addr %s146, 3
        %s148 = scalar_lea.vmem %s0, %s147
        %p149 = pneg %p38
        %p150 = pneg %p35
        %p151 = pneg %p59
        %p152 = pneg %p56
        %p153 = pneg %p80
        %p154 = pneg %p77
        %p155 = pneg %p106
        %p156 = pneg %p103
        %s157 = sand.u32 %s93, 1
        %s158 = scalar_lea.sflag [#allocation4], %s157
        %s159 = sand.u32 %s93, 1
        %s160 = smul.addr %s159, 6
        %s161 = scalar_lea.vmem [#allocation3], %s160
        %p162 = scmp.lt.s32.totalorder %s17, 1
        %s163 = scalar_select %p162, %s17, 1
        %s164 = smul.addr %s163, 3
        %s165 = scalar_lea.vmem %s0, %s164
        %v167 = vld [vmem:[%s165] sm:$0x7]
        %v170 = vunpack.c.l.s4 1935823168
        %v171 = vunpack.c.0.s8 %v170
        %v172 = vlaneseq
        %v173 = vshrl.u32 %v172, 7
        %v174 = vsub.s32 %v171, %v173
        %v175 = vrot.slane %v167, %v174
        %v176 = vcombine.high %v175, %v175
        %v178 = vunpack.c.l.s4 1935823168
        %v179 = vunpack.c.0.s8 %v178
        %v180 = vlaneseq
        %v181 = vshrl.u32 %v180, 7
        %v182 = vsub.s32 %v179, %v181
        %v183 = vrot.slane %v175, %v182
        %v185 = vunpack.c.l.s4 1935823168
        %v186 = vunpack.c.0.s8 %v185
        %v187 = vlaneseq
        %v188 = vshrl.u32 %v187, 7
        %v189 = vsub.s32 %v186, %v188
        %v190 = vrot.slane %v176, %v189
        %191 = vrot.lane.b32.xlu0 %v183, 111
        %v192 = vpop.permute.xlu0 %191
        %193 = vrot.lane.b32.xlu0 %v190, 111
        %v194 = vpop.permute.xlu0 %193
        %v195 = vrot.slane %v192, 4
        %v196 = vrot.slane %v194, 4
        %vm197 = vcmask 1043456
        %v198 = vsel %vm197, %v195, %v196
        %vm199 = vcmask 908288
        %v200 = vsel %vm199, %v192, %v198
        %vm203 = vcmask 1040384
        %vm204 = vsmask.f32 256
        %vm205 = vmand %vm203, %vm204
        %vm206 = vcmask 1044484
        %vm207 = vsmask.f32 4352
        %vm208 = vmand %vm206, %vm207
        %vm209 = vmor %vm208, %vm205
        %v210 = vld [vmem:[#allocation2] sm:$0x11]
        %v211 = vsel %vm209, %v200, %v210
        %212 = vst [vmem:[#allocation2] sm:$0x11] %v211
        %vm213 = vcmask 253952
        %vm214 = vmand %vm213, %vm204
        %v215 = vld [vmem:[#allocation2 + $0x8] sm:$0x1]
        %v216 = vsel %vm214, %v194, %v215
        %217 = vst [vmem:[#allocation2 + $0x8] sm:$0x1] %v216
        %v218 = vld [vmem:[%s165] sm:$0x7]
        %v221 = vunpack.c.l.s4 1935823168
        %v222 = vunpack.c.0.s8 %v221
        %v223 = vlaneseq
        %v224 = vshrl.u32 %v223, 7
        %v225 = vsub.s32 %v222, %v224
        %v226 = vrot.slane %v218, %v225
        %v227 = vcombine.high %v226, %v226
        %v229 = vunpack.c.l.s4 1935823168
        %v230 = vunpack.c.0.s8 %v229
        %v231 = vlaneseq
        %v232 = vshrl.u32 %v231, 7
        %v233 = vsub.s32 %v230, %v232
        %v234 = vrot.slane %v226, %v233
        %v236 = vunpack.c.l.s4 1935823168
        %v237 = vunpack.c.0.s8 %v236
        %v238 = vlaneseq
        %v239 = vshrl.u32 %v238, 7
        %v240 = vsub.s32 %v237, %v239
        %v241 = vrot.slane %v227, %v240
        %v243 = vshll.u32 %v234, 16
        %v246 = vshll.u32 %v241, 16
        %248 = vrot.lane.b32.xlu0 %v243, 110
        %v249 = vpop.permute.xlu0 %248
        %250 = vrot.lane.b32.xlu0 %v246, 110
        %v251 = vpop.permute.xlu0 %250
        %v252 = vrot.slane %v249, 4
        %v253 = vrot.slane %v251, 4
        %v254 = vsel %vm197, %v252, %v253
        %vm255 = vcmask 900096
        %v256 = vsel %vm255, %v249, %v254
        %vm259 = vsmask.f32 7938
        %vm260 = vmand %vm203, %vm259
        %vm261 = vsmask.f32 7954
        %vm262 = vmand %vm206, %vm261
        %vm263 = vmor %vm262, %vm260
        %v264 = vld [vmem:[#allocation2] sm:$0x11]
        %v265 = vsel %vm263, %v256, %v264
        %266 = vst [vmem:[#allocation2] sm:$0x11] %v265
        %vm267 = vmand %vm213, %vm259
        %v268 = vld [vmem:[#allocation2 + $0x8] sm:$0x1]
        %v269 = vsel %vm267, %v251, %v268
        %270 = vst [vmem:[#allocation2 + $0x8] sm:$0x1] %v269
        %v271 = vld [vmem:[%s165] sm:$0x7]
        %v274 = vunpack.c.l.s4 1935823168
        %v275 = vunpack.c.0.s8 %v274
        %v276 = vlaneseq
        %v277 = vshrl.u32 %v276, 7
        %v278 = vsub.s32 %v275, %v277
        %v279 = vrot.slane %v271, %v278
        %v280 = vcombine.low %v279, %v279
        %v282 = vunpack.c.l.s4 1935823168
        %v283 = vunpack.c.0.s8 %v282
        %v284 = vlaneseq
        %v285 = vshrl.u32 %v284, 7
        %v286 = vsub.s32 %v283, %v285
        %v287 = vrot.slane %v280, %v286
        %v289 = vunpack.c.l.s4 1935823168
        %v290 = vunpack.c.0.s8 %v289
        %v291 = vlaneseq
        %v292 = vshrl.u32 %v291, 7
        %v293 = vsub.s32 %v290, %v292
        %v294 = vrot.slane %v279, %v293
        %295 = vrot.lane.b32.xlu0 %v287, 109
        %v296 = vpop.permute.xlu0 %295
        %297 = vrot.lane.b32.xlu0 %v294, 109
        %v298 = vpop.permute.xlu0 %297
        %v299 = vrot.slane %v296, 4
        %v300 = vrot.slane %v298, 4
        %v301 = vsel %vm197, %v299, %v300
        %vm302 = vcmask 891904
        %v303 = vsel %vm302, %v296, %v301
        %vm306 = vcmask 1041409
        %vm307 = vsmask.f32 1280
        %vm308 = vmand %vm306, %vm307
        %vm309 = vcmask 1045509
        %vm310 = vsmask.f32 5376
        %vm311 = vmand %vm309, %vm310
        %vm312 = vmor %vm311, %vm308
        %v313 = vld [vmem:[#allocation2] sm:$0x22]
        %v314 = vsel %vm312, %v303, %v313
        %315 = vst [vmem:[#allocation2] sm:$0x22] %v314
        %vm316 = vcmask 254977
        %vm317 = vmand %vm316, %vm307
        %v318 = vld [vmem:[#allocation2 + $0x8] sm:$0x2]
        %v319 = vsel %vm317, %v298, %v318
        %320 = vst [vmem:[#allocation2 + $0x8] sm:$0x2] %v319
        %v321 = vld [vmem:[%s165] sm:$0x7]
        %v324 = vunpack.c.l.s4 1935823168
        %v325 = vunpack.c.0.s8 %v324
        %v326 = vlaneseq
        %v327 = vshrl.u32 %v326, 7
        %v328 = vsub.s32 %v325, %v327
        %v329 = vrot.slane %v321, %v328
        %v330 = vcombine.high %v329, %v329
        %v332 = vunpack.c.l.s4 1935823168
        %v333 = vunpack.c.0.s8 %v332
        %v334 = vlaneseq
        %v335 = vshrl.u32 %v334, 7
        %v336 = vsub.s32 %v333, %v335
        %v337 = vrot.slane %v329, %v336
        %v339 = vunpack.c.l.s4 1935823168
        %v340 = vunpack.c.0.s8 %v339
        %v341 = vlaneseq
        %v342 = vshrl.u32 %v341, 7
        %v343 = vsub.s32 %v340, %v342
        %v344 = vrot.slane %v330, %v343
        %v346 = vshll.u32 %v337, 16
        %v348 = vrot.slane %v346, 7
        %v350 = vshll.u32 %v344, 16
        %v352 = vrot.slane %v350, 7
        %353 = vrot.lane.b32.xlu0 %v348, 93
        %v354 = vpop.permute.xlu0 %353
        %355 = vrot.lane.b32.xlu0 %v352, 93
        %v356 = vpop.permute.xlu0 %355
        %v357 = vrot.slane %v354, 4
        %v358 = vrot.slane %v356, 4
        %v359 = vsel %vm197, %v357, %v358
        %vm360 = vcmask 760832
        %v361 = vsel %vm360, %v354, %v359
        %vm364 = vsmask.f32 7942
        %vm365 = vmand %vm306, %vm364
        %vm366 = vsmask.f32 7958
        %vm367 = vmand %vm309, %vm366
        %vm368 = vmor %vm367, %vm365
        %v369 = vld [vmem:[#allocation2] sm:$0x22]
        %v370 = vsel %vm368, %v361, %v369
        %371 = vst [vmem:[#allocation2] sm:$0x22] %v370
        %vm372 = vmand %vm316, %vm364
        %v373 = vld [vmem:[#allocation2 + $0x8] sm:$0x2]
        %v374 = vsel %vm372, %v356, %v373
        %375 = vst [vmem:[#allocation2 + $0x8] sm:$0x2] %v374
        %v376 = vld [vmem:[%s165] sm:$0x7]
        %v378 = vcombine.low %v376, %v376
        %v380 = vunpack.c.l.s4 1935823168
        %v381 = vunpack.c.0.s8 %v380
        %v382 = vlaneseq
        %v383 = vshrl.u32 %v382, 7
        %v384 = vsub.s32 %v381, %v383
        %v385 = vrot.slane %v378, %v384
        %v386 = vcombine.high %v385, %v385
        %v388 = vunpack.c.l.s4 1935823168
        %v389 = vunpack.c.0.s8 %v388
        %v390 = vlaneseq
        %v391 = vshrl.u32 %v390, 7
        %v392 = vsub.s32 %v389, %v391
        %v393 = vrot.slane %v385, %v392
        %v395 = vunpack.c.l.s4 1935823168
        %v396 = vunpack.c.0.s8 %v395
        %v397 = vlaneseq
        %v398 = vshrl.u32 %v397, 7
        %v399 = vsub.s32 %v396, %v398
        %v400 = vrot.slane %v386, %v399
        %401 = vrot.lane.b32.xlu0 %v393, 92
        %v402 = vpop.permute.xlu0 %401
        %403 = vrot.lane.b32.xlu0 %v400, 92
        %v404 = vpop.permute.xlu0 %403
        %v405 = vrot.slane %v402, 4
        %v406 = vrot.slane %v404, 4
        %v407 = vsel %vm197, %v405, %v406
        %vm408 = vcmask 752640
        %v409 = vsel %vm408, %v402, %v407
        %vm412 = vcmask 1042434
        %vm413 = vsmask.f32 2304
        %vm414 = vmand %vm412, %vm413
        %vm415 = vcmask 1046534
        %vm416 = vsmask.f32 6400
        %vm417 = vmand %vm415, %vm416
        %vm418 = vmor %vm417, %vm414
        %v419 = vld [vmem:[#allocation2] sm:$0x44]
        %v420 = vsel %vm418, %v409, %v419
        %421 = vst [vmem:[#allocation2] sm:$0x44] %v420
        %vm422 = vcmask 256002
        %vm423 = vmand %vm422, %vm413
        %v424 = vld [vmem:[#allocation2 + $0x8] sm:$0x4]
        %v425 = vsel %vm423, %v404, %v424
        %426 = vst [vmem:[#allocation2 + $0x8] sm:$0x4] %v425
        %v427 = vld [vmem:[%s165] sm:$0x7]
        %v430 = vunpack.c.l.s4 1935823168
        %v431 = vunpack.c.0.s8 %v430
        %v432 = vlaneseq
        %v433 = vshrl.u32 %v432, 7
        %v434 = vsub.s32 %v431, %v433
        %v435 = vrot.slane %v427, %v434
        %v436 = vcombine.high %v435, %v435
        %v438 = vunpack.c.l.s4 1935823168
        %v439 = vunpack.c.0.s8 %v438
        %v440 = vlaneseq
        %v441 = vshrl.u32 %v440, 7
        %v442 = vsub.s32 %v439, %v441
        %v443 = vrot.slane %v435, %v442
        %v445 = vunpack.c.l.s4 1935823168
        %v446 = vunpack.c.0.s8 %v445
        %v447 = vlaneseq
        %v448 = vshrl.u32 %v447, 7
        %v449 = vsub.s32 %v446, %v448
        %v450 = vrot.slane %v436, %v449
        %v452 = vshll.u32 %v443, 16
        %v454 = vrot.slane %v452, 6
        %v456 = vshll.u32 %v450, 16
        %v458 = vrot.slane %v456, 6
        %459 = vrot.lane.b32.xlu0 %v454, 91
        %v460 = vpop.permute.xlu0 %459
        %461 = vrot.lane.b32.xlu0 %v458, 91
        %v462 = vpop.permute.xlu0 %461
        %v463 = vrot.slane %v460, 4
        %v464 = vrot.slane %v462, 4
        %v465 = vsel %vm197, %v463, %v464
        %vm466 = vcmask 744448
        %v467 = vsel %vm466, %v460, %v465
        %vm470 = vsmask.f32 7946
        %vm471 = vmand %vm412, %vm470
        %vm472 = vsmask.f32 7962
        %vm473 = vmand %vm415, %vm472
        %vm474 = vmor %vm473, %vm471
        %v475 = vld [vmem:[#allocation2] sm:$0x44]
        %v476 = vsel %vm474, %v467, %v475
        %477 = vst [vmem:[#allocation2] sm:$0x44] %v476
        %vm478 = vmand %vm422, %vm470
        %v479 = vld [vmem:[#allocation2 + $0x8] sm:$0x4]
        %v480 = vsel %vm478, %v462, %v479
        %481 = vst [vmem:[#allocation2 + $0x8] sm:$0x4] %v480
        %v482 = vld [vmem:[%s165] sm:$0x7]
        %v484 = vcombine.low %v482, %v482
        %v486 = vunpack.c.l.s4 1935823168
        %v487 = vunpack.c.0.s8 %v486
        %v488 = vlaneseq
        %v489 = vshrl.u32 %v488, 7
        %v490 = vsub.s32 %v487, %v489
        %v491 = vrot.slane %v484, %v490
        %v492 = vcombine.low %v491, %v491
        %v494 = vunpack.c.l.s4 1935823168
        %v495 = vunpack.c.0.s8 %v494
        %v496 = vlaneseq
        %v497 = vshrl.u32 %v496, 7
        %v498 = vsub.s32 %v495, %v497
        %v499 = vrot.slane %v492, %v498
        %v501 = vunpack.c.l.s4 1935823168
        %v502 = vunpack.c.0.s8 %v501
        %v503 = vlaneseq
        %v504 = vshrl.u32 %v503, 7
        %v505 = vsub.s32 %v502, %v504
        %v506 = vrot.slane %v491, %v505
        %507 = vrot.lane.b32.xlu0 %v499, 75
        %v508 = vpop.permute.xlu0 %507
        %509 = vrot.lane.b32.xlu0 %v506, 75
        %v510 = vpop.permute.xlu0 %509
        %v511 = vrot.slane %v508, 4
        %v512 = vrot.slane %v510, 4
        %v513 = vsel %vm197, %v511, %v512
        %vm514 = vcmask 613376
        %v515 = vsel %vm514, %v508, %v513
        %vm518 = vcmask 1043459
        %vm519 = vsmask.f32 3328
        %vm520 = vmand %vm518, %vm519
        %vm521 = vcmask 1047559
        %vm522 = vsmask.f32 7424
        %vm523 = vmand %vm521, %vm522
        %vm524 = vmor %vm523, %vm520
        %v525 = vld [vmem:[#allocation2] sm:$0x88]
        %v526 = vsel %vm524, %v515, %v525
        %527 = vst [vmem:[#allocation2] sm:$0x88] %v526
        %vm528 = vcmask 257027
        %vm529 = vmand %vm528, %vm519
        %v530 = vld [vmem:[#allocation2 + $0x8] sm:$0x8]
        %v531 = vsel %vm529, %v510, %v530
        %532 = vst [vmem:[#allocation2 + $0x8] sm:$0x8] %v531
        %v533 = vld [vmem:[%s165] sm:$0x7]
        %v536 = vunpack.c.l.s4 1935823168
        %v537 = vunpack.c.0.s8 %v536
        %v538 = vlaneseq
        %v539 = vshrl.u32 %v538, 7
        %v540 = vsub.s32 %v537, %v539
        %v541 = vrot.slane %v533, %v540
        %v542 = vcombine.high %v541, %v541
        %v544 = vunpack.c.l.s4 1935823168
        %v545 = vunpack.c.0.s8 %v544
        %v546 = vlaneseq
        %v547 = vshrl.u32 %v546, 7
        %v548 = vsub.s32 %v545, %v547
        %v549 = vrot.slane %v541, %v548
        %v551 = vunpack.c.l.s4 1935823168
        %v552 = vunpack.c.0.s8 %v551
        %v553 = vlaneseq
        %v554 = vshrl.u32 %v553, 7
        %v555 = vsub.s32 %v552, %v554
        %v556 = vrot.slane %v542, %v555
        %v558 = vshll.u32 %v549, 16
        %v560 = vrot.slane %v558, 5
        %v562 = vshll.u32 %v556, 16
        %v564 = vrot.slane %v562, 5
        %565 = vrot.lane.b32.xlu0 %v560, 74
        %v566 = vpop.permute.xlu0 %565
        %567 = vrot.lane.b32.xlu0 %v564, 74
        %v568 = vpop.permute.xlu0 %567
        %v569 = vrot.slane %v566, 4
        %v570 = vrot.slane %v568, 4
        %v571 = vsel %vm197, %v569, %v570
        %vm572 = vcmask 605184
        %v573 = vsel %vm572, %v566, %v571
        %vm576 = vsmask.f32 7950
        %vm577 = vmand %vm518, %vm576
        %vm578 = vsmask.f32 7966
        %vm579 = vmand %vm521, %vm578
        %vm580 = vmor %vm579, %vm577
        %v581 = vld [vmem:[#allocation2] sm:$0x88]
        %v582 = vsel %vm580, %v573, %v581
        %583 = vst [vmem:[#allocation2] sm:$0x88] %v582
        %vm584 = vmand %vm528, %vm576
        %v585 = vld [vmem:[#allocation2 + $0x8] sm:$0x8]
        %v586 = vsel %vm584, %v568, %v585
        %587 = vst [vmem:[#allocation2 + $0x8] sm:$0x8] %v586
        %v588 = vld [vmem:[%s165] sm:$0x7]
        %v591 = vunpack.c.l.s4 1935823168
        %v592 = vunpack.c.0.s8 %v591
        %v593 = vlaneseq
        %v594 = vshrl.u32 %v593, 7
        %v595 = vsub.s32 %v592, %v594
        %v596 = vrot.slane %v588, %v595
        %v597 = vcombine.high %v596, %v596
        %v599 = vunpack.c.l.s4 1935823168
        %v600 = vunpack.c.0.s8 %v599
        %v601 = vlaneseq
        %v602 = vshrl.u32 %v601, 7
        %v603 = vsub.s32 %v600, %v602
        %v604 = vrot.slane %v596, %v603
        %v606 = vunpack.c.l.s4 1935823168
        %v607 = vunpack.c.0.s8 %v606
        %v608 = vlaneseq
        %v609 = vshrl.u32 %v608, 7
        %v610 = vsub.s32 %v607, %v609
        %v611 = vrot.slane %v597, %v610
        %612 = vrot.lane.b32.xlu0 %v604, 73
        %v613 = vpop.permute.xlu0 %612
        %614 = vrot.lane.b32.xlu0 %v611, 73
        %v615 = vpop.permute.xlu0 %614
        %v616 = vrot.slane %v613, 4
        %v617 = vrot.slane %v615, 4
        %v618 = vsel %vm197, %v616, %v617
        %vm619 = vcmask 596992
        %v620 = vsel %vm619, %v613, %v618
        %v623 = vld [vmem:[#allocation2 + $0xc] sm:$0x11]
        %v624 = vsel %vm209, %v620, %v623
        %625 = vst [vmem:[#allocation2 + $0xc] sm:$0x11] %v624
        %v626 = vld [vmem:[#allocation2 + $0x14] sm:$0x1]
        %v627 = vsel %vm214, %v615, %v626
        %628 = vst [vmem:[#allocation2 + $0x14] sm:$0x1] %v627
        %v629 = vld [vmem:[%s1] sm:$0x3]
        %v630 = vld [vmem:[#allocation2] sm:$0xff]
        %v631 = vld [vmem:[#allocation2 + $0x8] sm:$0xf]
        %v632 = vld [vmem:[#allocation2 + $0xc] sm:$0x11]
        %v633 = vld [vmem:[#allocation2 + $0x14] sm:$0x1]
        %v634 = vld [vmem:[%s2] sm:$0xf]
        %636 = vset.pattern.permute.xlu0 0
        %637 = vperm.xlu0 %636, %v634
        %v638 = vpop.permute.xlu0 %637
        %v644 = vunpack.c.l.b16 %v630
        %v645 = vunpack.c.h.b16 %v630
        %v646 = vunpack.c.l.b16 %v631
        %v647 = vunpack.c.l.b16 %v632
        %v648 = vunpack.c.h.b16 %v632
        %v649 = vunpack.c.l.b16 %v633
        %v650 = vpack.c.b16 %v647, %v644
        %v651 = vpack.c.b16 %v648, %v645
        %v652 = vpack.c.b16 %v649, %v646
        %vm653 = vcmask 72704
        %v655 = vsel %vm653, %v629, 0
        %vm657 = vcmask 1043456
        %vm658 = vcmask 1044480
        %v659 = vsel %vm657, 4294967295, 65535
        %v660 = vsel %vm658, %v659, 0
        %v662 = vand.u32 %v650, %v660
        %v665 = vand.u32 %v651, %v660
        %v668 = vand.u32 %v652, %v660
        %670 = vmatprep.subr.bf16.mxu0 %v665
        %671 = vmatpush1.bf16.msra.mxu0 %v662
        %672 = vmatprep.subr.bf16.mxu0 0
        %673 = vmatpush1.bf16.msra.mxu0 0
        %674 = vmatprep.subr.bf16.mxu0 0
        %675 = vmatpush1.bf16.msra.mxu0 0
        %676 = vmatprep.subr.bf16.mxu0 0
        %677 = vmatpush1.bf16.msra.mxu0 0
        %678 = vmatprep.subr.bf16.mxu0 0
        %679 = vmatpush1.bf16.msra.mxu0 0
        %680 = vmatprep.subr.bf16.mxu0 0
        %681 = vmatpush1.bf16.msra.mxu0 0
        %682 = vmatprep.subr.bf16.mxu0 0
        %683 = vmatpush1.bf16.msra.mxu0 0
        %684 = vmatprep.subr.bf16.mxu0 0
        %685 = vmatpush1.bf16.msra.mxu0 0
        %686 = vmatprep.subr.bf16.mxu0 0
        %687 = vmatpush1.bf16.msra.mxu0 0
        %688 = vmatprep.subr.bf16.mxu0 0
        %689 = vmatpush1.bf16.msra.mxu0 0
        %690 = vmatprep.subr.bf16.mxu0 0
        %691 = vmatpush1.bf16.msra.mxu0 0
        %692 = vmatprep.subr.bf16.mxu0 0
        %693 = vmatpush1.bf16.msra.mxu0 0
        %694 = vmatprep.subr.bf16.mxu0 0
        %695 = vmatpush1.bf16.msra.mxu0 0
        %696 = vmatprep.subr.bf16.mxu0 0
        %697 = vmatpush1.bf16.msra.mxu0 0
        %698 = vmatprep.subr.bf16.mxu0 0
        %699 = vmatpush1.bf16.msra.mxu0 0
        %700 = vmatprep.subr.bf16.mxu0 0
        %701 = vmatpush1.bf16.msra.mxu0 0
        %702 = vmatprep.mubr.bf16.mxu0 0
        %703 = vmatmul.mubr.bf16.gmra.mrb[0].mxu0 %v655
        %v704 = vpop.f32.mrb[0].mxu0
        %v705 = vadd.f32 %v638, %v704
        %v706 = vpop.f32.mrb[0].mxu0
        %v707 = vadd.f32 %v638, %v706
        %v708 = vpop.f32.mrb[0].mxu0
        %v709 = vpop.f32.mrb[0].mxu0
        %710 = vdwg.mxu0
        %711 = vmatprep.subr.bf16.mxu0 0
        %712 = vmatpush1.bf16.msra.mxu0 %v668
        %713 = vmatprep.subr.bf16.mxu0 0
        %714 = vmatpush1.bf16.msra.mxu0 0
        %715 = vmatprep.subr.bf16.mxu0 0
        %716 = vmatpush1.bf16.msra.mxu0 0
        %717 = vmatprep.subr.bf16.mxu0 0
        %718 = vmatpush1.bf16.msra.mxu0 0
        %719 = vmatprep.subr.bf16.mxu0 0
        %720 = vmatpush1.bf16.msra.mxu0 0
        %721 = vmatprep.subr.bf16.mxu0 0
        %722 = vmatpush1.bf16.msra.mxu0 0
        %723 = vmatprep.subr.bf16.mxu0 0
        %724 = vmatpush1.bf16.msra.mxu0 0
        %725 = vmatprep.subr.bf16.mxu0 0
        %726 = vmatpush1.bf16.msra.mxu0 0
        %727 = vmatprep.subr.bf16.mxu0 0
        %728 = vmatpush1.bf16.msra.mxu0 0
        %729 = vmatprep.subr.bf16.mxu0 0
        %730 = vmatpush1.bf16.msra.mxu0 0
        %731 = vmatprep.subr.bf16.mxu0 0
        %732 = vmatpush1.bf16.msra.mxu0 0
        %733 = vmatprep.subr.bf16.mxu0 0
        %734 = vmatpush1.bf16.msra.mxu0 0
        %735 = vmatprep.subr.bf16.mxu0 0
        %736 = vmatpush1.bf16.msra.mxu0 0
        %737 = vmatprep.subr.bf16.mxu0 0
        %738 = vmatpush1.bf16.msra.mxu0 0
        %739 = vmatprep.subr.bf16.mxu0 0
        %740 = vmatpush1.bf16.msra.mxu0 0
        %741 = vmatprep.subr.bf16.mxu0 0
        %742 = vmatpush1.bf16.msra.mxu0 0
        %743 = vmatprep.mubr.bf16.mxu0 0
        %744 = vmatmul.mubr.bf16.gmra.mrb[0].mxu0 %v655
        %v745 = vpop.f32.mrb[0].mxu0
        %v746 = vadd.f32 %v638, %v745
        %v747 = vpop.f32.mrb[0].mxu0
        %v748 = vpop.f32.mrb[0].mxu0
        %v749 = vpop.f32.mrb[0].mxu0
        %750 = vdwg.mxu0
        %v751 = vpack.c.bf16 %v705, %v705
        %v752 = vpack.c.bf16 %v707, %v707
        %v753 = vpack.c.bf16 %v746, %v746
        %v757 = vcombine.low %v751, %v752
        %v759 = vunpack.c.l.s4 1983009808
        %v760 = vunpack.c.0.s8 %v759
        %v761 = vlaneseq
        %v762 = vshrl.u32 %v761, 7
        %v763 = vsub.s32 %v760, %v762
        %v764 = vrot.slane %v757, %v763
        %v766 = vunpack.c.l.s4 1983009808
        %v767 = vunpack.c.0.s8 %v766
        %v768 = vlaneseq
        %v769 = vshrl.u32 %v768, 7
        %v770 = vsub.s32 %v767, %v769
        %v771 = vrot.slane %v753, %v770
        %v772 = vcombine.low %v764, %v771
        %vm774 = vcmask 1041408
        %vm775 = vcmask 1043458
        %vm776 = vmor %vm775, %vm774
        %vm777 = vcmask 259076
        %vm778 = vmor %vm777, %vm776
        %779 = vst.msk [vmem:[%s161] sm:$0x3f] %vm778, %v772
        %s780 = sand.u32 %s93, 1
        %s781 = scalar_lea.sflag [#allocation4], %s780
        %s782 = sand.u32 %s93, 1
        %s783 = smul.addr %s782, 6
        %s784 = scalar_lea.vmem [#allocation3], %s783
        // Predicated region
        $region33: #{tpu_custom_call.1} parent=31 // pred_check
          %p785 = pneg %p103
        $region34: #{tpu_custom_call.1} parent=31 // pred_check_branch
          %787 = sbr.rel (%p785) target = $region36
        $region35: #{tpu_custom_call.1} parent=31 // pred_region
          %s789 = ssub.s32 96, 96
          %790 = vsyncadd %s781, %s789
          %s791 = smul.addr %s17, 3
          %s792 = smul.addr %s791, 32
          %s793 = scalar_lea.hbm %s3, %s792
          %s795 = sshll.u32 %s784, 4
          %s796 = int_to_ptr.vmem [resolvable:$true] %s795
          %798 = dma.vmem_to_hbm [thread:$0]  %s796, 96, %s793, %s781
        $region36: #{tpu_custom_call.1} parent=31 // pred_fallthru
          _
      $region32: #{tpu_custom_call.1} parent=5 // pred_fallthru
        _
      %p799 = scmp.le.s32.totalorder 2, %s12
      // Predicated region
      $region37: #{tpu_custom_call.1} parent=5 // pred_check
        %p800 = pneg %p799
      $region38: #{tpu_custom_call.1} parent=5 // pred_check_branch
        %802 = sbr.rel (%p800) target = $region40
      $region39: #{tpu_custom_call.1} parent=5 // pred_region
        %s803 = ssub.s32 %s12, 2
        // Predicated region
        $region41: #{tpu_custom_call.1} parent=39 // pred_check
          %p804 = pneg %p109
        $region42: #{tpu_custom_call.1} parent=39 // pred_check_branch
          %806 = sbr.rel (%p804) target = $region44
        $region43: #{tpu_custom_call.1} parent=39 // pred_region
          %s807 = sand.u32 %s94, 1
          %s808 = scalar_lea.sflag [#allocation4], %s807
          %s809 = sand.u32 %s94, 1
          %s810 = smul.addr %s809, 6
          %s811 = scalar_lea.vmem [#allocation3], %s810
          %812 = dma.done %s808, 96
        $region44: #{tpu_custom_call.1} parent=39 // pred_fallthru
          _
      $region40: #{tpu_custom_call.1} parent=5 // pred_fallthru
        _
    $region6: #{tpu_custom_call.1} parent=1 // loop_footer
      %s16 = sadd.s32 1, %s12
    $region7: #{tpu_custom_call.1} parent=1 // loop_footer_branch
      %11 = sbr.rel target = $region3
    $region8: #{tpu_custom_call.1} parent=1 // loop_exit
      _
    %813 = vsyncpa [#allocation4], 1
    %s814 = scalar_lea.sflag [#allocation4], 1
    %815 = vsyncpa %s814, 1

</llo_original>
